<compile_context>
chip_gen: v5e
topology: v5e:2x2
jax: 0.10.0
libtpu: 0.0.40
codegen_flags: <defaults>
</compile_context>

<pallas_src>
import functools

import jax
import jax.numpy as jnp
from jax.experimental import pallas as pl
from jax.experimental.pallas import tpu as pltpu


_INV_SQRT2 = 0.7071067811865476


def _erf(x):
    # Abramowitz & Stegun 7.1.26 polynomial approximation, |err| <= 1.5e-7.
    # Uses only exp/abs/where/mul/add so it lowers cleanly inside Mosaic.
    # TODO(synk): swap for jax.lax.erf if/when erf lowering is guaranteed in Mosaic.
    a1, a2, a3, a4, a5 = (0.254829592, -0.284496736, 1.421413741,
                          -1.453152027, 1.061405429)
    p = 0.3275911
    ax = jnp.abs(x)
    t = 1.0 / (1.0 + p * ax)
    poly = ((((a5 * t + a4) * t + a3) * t + a2) * t + a1) * t
    y = 1.0 - poly * jnp.exp(-ax * ax)
    return jnp.where(x < 0.0, -y, y)


def _gelu(x):
    # Exact (erf-based) GELU, matching transformers' `gelu` for Roberta.
    return 0.5 * x * (1.0 + _erf(x * _INV_SQRT2))


def _lm_head_kernel(feat_ref, wd_ref, bd_ref, lnw_ref, lnb_ref,
                    wdec_ref, bdec_ref, out_ref, h_ref, *, eps):
    j = pl.program_id(1)

    # dense(H->H) + GELU + TF-style LayerNorm, once per row tile.
    @pl.when(j == 0)
    def _():
        x = feat_ref[...].astype(jnp.float32)
        z = jnp.dot(x, wd_ref[...].astype(jnp.float32),
                    preferred_element_type=jnp.float32)
        z = z + bd_ref[...].astype(jnp.float32)
        g = _gelu(z)
        # one-pass mean / variance over the hidden axis
        u = jnp.mean(g, axis=-1, keepdims=True)
        sq = jnp.mean(g * g, axis=-1, keepdims=True)
        var = jnp.maximum(sq - u * u, 0.0)
        y = (g - u) * jax.lax.rsqrt(var + eps)
        h_ref[...] = (lnw_ref[...].astype(jnp.float32) * y
                      + lnb_ref[...].astype(jnp.float32))

    # decoder projection for this vocab tile (+ bias)
    logits = jnp.dot(h_ref[...], wdec_ref[...].astype(jnp.float32),
                     preferred_element_type=jnp.float32)
    out_ref[...] = (logits + bdec_ref[...].astype(jnp.float32)).astype(out_ref.dtype)


def _round_up(x, m):
    return (x + m - 1) // m * m


def roberta_lm_head(features, w_dense, b_dense, ln_weight, ln_bias,
                    w_decoder, decoder_bias, *, eps=1e-5,
                    block_rows=256, block_vocab=512):
    """features: (..., H); w_dense: (H, H); w_decoder: (V, H) (PyTorch layout)."""
    orig_shape = features.shape
    H = orig_shape[-1]
    V = w_decoder.shape[0]

    x2 = features.reshape(-1, H)
    R = x2.shape[0]

    # Tile sizes: large row tiles (mem-bound), lane-dense vocab tiles.
    tm = min(block_rows, _round_up(R, 8))
    tn = min(block_vocab, _round_up(V, 128))
    R_pad = _round_up(R, tm)
    V_pad = _round_up(V, tn)

    if R_pad != R:
        x2 = jnp.pad(x2, ((0, R_pad - R), (0, 0)))

    wd_t = w_dense.T                    # (H_in, H_out): x @ wd_t == x @ W^T
    wdec_t = w_decoder.T                # (H, V)
    dec_b = decoder_bias
    if V_pad != V:
        wdec_t = jnp.pad(wdec_t, ((0, 0), (0, V_pad - V)))
        dec_b = jnp.pad(dec_b, (0, V_pad - V))

    bd2 = b_dense.reshape(1, H)
    lnw2 = ln_weight.reshape(1, H)
    lnb2 = ln_bias.reshape(1, H)
    dec_b2 = dec_b.reshape(1, V_pad)

    out_dtype = features.dtype
    grid = (R_pad // tm, V_pad // tn)

    # VMEM budget: double-buffered in/out tiles + the f32 scratch.
    ib = jnp.dtype(features.dtype).itemsize
    wb = jnp.dtype(w_dense.dtype).itemsize
    ob = jnp.dtype(out_dtype).itemsize
    est = 2 * (tm * H * ib            # features tile
               + H * H * wb + 3 * H * wb   # dense weight + dense bias + LN params
               + H * tn * wb + tn * wb     # decoder weight tile + bias tile
               + tm * tn * ob)             # output tile
    est += tm * H * 4                      # scratch (f32)
    vmem_limit = int(max(est + (8 << 20), 32 << 20))

    kernel = functools.partial(_lm_head_kernel, eps=float(eps))

    out = pl.pallas_call(
        kernel,
        out_shape=jax.ShapeDtypeStruct((R_pad, V_pad), out_dtype),
        grid_spec=pltpu.PrefetchScalarGridSpec(
            num_scalar_prefetch=0,
            grid=grid,
            in_specs=[
                pl.BlockSpec((tm, H), lambda i, j: (i, 0)),   # features row tile
                pl.BlockSpec((H, H), lambda i, j: (0, 0)),    # dense weight (T)
                pl.BlockSpec((1, H), lambda i, j: (0, 0)),    # dense bias
                pl.BlockSpec((1, H), lambda i, j: (0, 0)),    # LN weight
                pl.BlockSpec((1, H), lambda i, j: (0, 0)),    # LN bias
                pl.BlockSpec((H, tn), lambda i, j: (0, j)),   # decoder weight (T) tile
                pl.BlockSpec((1, tn), lambda i, j: (0, j)),   # decoder bias tile
            ],
            out_specs=pl.BlockSpec((tm, tn), lambda i, j: (i, j)),
            scratch_shapes=[pltpu.VMEM((tm, H), jnp.float32)],
        ),
        compiler_params=pltpu.CompilerParams(
            dimension_semantics=("parallel", "arbitrary"),
            vmem_limit_bytes=vmem_limit,
        ),
    )(x2, wd_t, bd2, lnw2, lnb2, wdec_t, dec_b2)

    out = out[:R, :V]
    return out.reshape(orig_shape[:-1] + (V,))


if __name__ == "__main__":
    key = jax.random.PRNGKey(0)
    batch, seq, hidden, vocab = 2, 8, 32, 96
    eps = 1e-5

    ks = jax.random.split(key, 7)
    features = jax.random.normal(ks[0], (batch, seq, hidden), dtype=jnp.float32)
    w_dense = jax.random.normal(ks[1], (hidden, hidden), jnp.float32) / jnp.sqrt(hidden)
    b_dense = 0.05 * jax.random.normal(ks[2], (hidden,), jnp.float32)
    ln_weight = 1.0 + 0.05 * jax.random.normal(ks[3], (hidden,), jnp.float32)
    ln_bias = 0.05 * jax.random.normal(ks[4], (hidden,), jnp.float32)
    w_decoder = jax.random.normal(ks[5], (vocab, hidden), jnp.float32) / jnp.sqrt(hidden)
    decoder_bias = 0.05 * jax.random.normal(ks[6], (vocab,), jnp.float32)

    out = roberta_lm_head(features, w_dense, b_dense, ln_weight, ln_bias,
                          w_decoder, decoder_bias, eps=eps)
    out = jax.block_until_ready(out)

    # Pure-JAX reference matching the PyTorch module:
    # x = dense(features); x = gelu(x); x = BertLayerNorm(x); x = decoder(x) + bias
    hp = jax.lax.Precision.HIGHEST
    x = features.reshape(-1, hidden).astype(jnp.float32)
    z = jnp.dot(x, w_dense.T, precision=hp) + b_dense
    g = jax.nn.gelu(z, approximate=False)
    u = jnp.mean(g, axis=-1, keepdims=True)
    s = jnp.mean((g - u) ** 2, axis=-1, keepdims=True)
    y = ln_weight * ((g - u) / jnp.sqrt(s + eps)) + ln_bias
    ref = (jnp.dot(y, w_decoder.T, precision=hp) + decoder_bias).reshape(batch, seq, vocab)

    assert out.shape == ref.shape
    err = float(jnp.max(jnp.abs(out - ref)))
    assert jnp.allclose(out, ref, atol=5e-3, rtol=5e-3), f"mismatch vs reference, max abs err={err}"

    print("KERNEL_OK")
</pallas_src>

<mosaic_0001>
module attributes {stable_mosaic.version = 11 : i64} {
  func.func @_lm_head_kernel(%arg0: i32, %arg1: i32, %arg2: memref<16x32xf32, #tpu.memory_space<vmem>>, %arg3: memref<32x32xf32, #tpu.memory_space<vmem>>, %arg4: memref<1x32xf32, #tpu.memory_space<vmem>>, %arg5: memref<1x32xf32, #tpu.memory_space<vmem>>, %arg6: memref<1x32xf32, #tpu.memory_space<vmem>>, %arg7: memref<32x128xf32, #tpu.memory_space<vmem>>, %arg8: memref<1x128xf32, #tpu.memory_space<vmem>>, %arg9: memref<16x128xf32, #tpu.memory_space<vmem>>, %arg10: memref<16x32xf32, #tpu.memory_space<vmem>>) attributes {dimension_semantics = [#tpu.dimension_semantics<parallel>, #tpu.dimension_semantics<arbitrary>], iteration_bounds = array<i64: 1, 1>, scalar_prefetch = 0 : i64, scratch_operands = 1 : i64, tpu.core_type = #tpu.core_type<tc>, window_params = [{transform_indices = @transform_0, window_bounds = array<i64: 16, 32>}, {pipeline_mode = #tpu.pipeline_mode<synchronous>, transform_indices = @transform_1, window_bounds = array<i64: 32, 32>}, {pipeline_mode = #tpu.pipeline_mode<synchronous>, transform_indices = @transform_2, window_bounds = array<i64: 1, 32>}, {pipeline_mode = #tpu.pipeline_mode<synchronous>, transform_indices = @transform_3, window_bounds = array<i64: 1, 32>}, {pipeline_mode = #tpu.pipeline_mode<synchronous>, transform_indices = @transform_4, window_bounds = array<i64: 1, 32>}, {transform_indices = @transform_5, window_bounds = array<i64: 32, 128>}, {transform_indices = @transform_6, window_bounds = array<i64: 1, 128>}, {transform_indices = @transform_7, window_bounds = array<i64: 16, 128>}]} {
    %c0_i32 = arith.constant 0 : i32
    %0 = arith.cmpi eq, %arg1, %c0_i32 : i32
    %1 = arith.extui %0 : i1 to i32
    %c0_i32_0 = arith.constant 0 : i32
    %2 = arith.cmpi ne, %1, %c0_i32_0 : i32
    scf.if %2 {
      %c0_8 = arith.constant 0 : index
      %c0_9 = arith.constant 0 : index
      %10 = vector.load %arg2[%c0_8, %c0_9] : memref<16x32xf32, #tpu.memory_space<vmem>>, vector<16x32xf32>
      %c0_10 = arith.constant 0 : index
      %c0_11 = arith.constant 0 : index
      %11 = vector.load %arg3[%c0_10, %c0_11] : memref<32x32xf32, #tpu.memory_space<vmem>>, vector<32x32xf32>
      %cst_12 = arith.constant dense<0.000000e+00> : vector<16x32xf32>
      %12 = tpu.matmul %10, %11, %cst_12 {dimension_numbers = #tpu.dot_dimension_numbers<[1], [0], [0], [1], [0, 0, 1, 1], [], []>} : vector<16x32xf32>, vector<32x32xf32>, vector<16x32xf32> -> vector<16x32xf32>
      %c0_13 = arith.constant 0 : index
      %c0_14 = arith.constant 0 : index
      %13 = vector.load %arg4[%c0_13, %c0_14] : memref<1x32xf32, #tpu.memory_space<vmem>>, vector<1x32xf32>
      %14 = vector.broadcast %13 : vector<1x32xf32> to vector<16x32xf32>
      %15 = arith.addf %12, %14 : vector<16x32xf32>
      %cst_15 = arith.constant 5.000000e-01 : f32
      %16 = vector.broadcast %cst_15 : f32 to vector<16x32xf32>
      %17 = arith.mulf %16, %15 : vector<16x32xf32>
      %cst_16 = arith.constant 0.707106769 : f32
      %18 = vector.broadcast %cst_16 : f32 to vector<16x32xf32>
      %19 = arith.mulf %15, %18 : vector<16x32xf32>
      %20 = math.absf %19 : vector<16x32xf32>
      %cst_17 = arith.constant 0.327591091 : f32
      %21 = vector.broadcast %cst_17 : f32 to vector<16x32xf32>
      %22 = arith.mulf %21, %20 : vector<16x32xf32>
      %cst_18 = arith.constant 1.000000e+00 : f32
      %23 = vector.broadcast %cst_18 : f32 to vector<16x32xf32>
      %24 = arith.addf %23, %22 : vector<16x32xf32>
      %cst_19 = arith.constant 1.000000e+00 : f32
      %25 = vector.broadcast %cst_19 : f32 to vector<16x32xf32>
      %26 = arith.divf %25, %24 : vector<16x32xf32>
      %cst_20 = arith.constant 1.06140542 : f32
      %27 = vector.broadcast %cst_20 : f32 to vector<16x32xf32>
      %28 = arith.mulf %27, %26 : vector<16x32xf32>
      %cst_21 = arith.constant -1.45315206 : f32
      %29 = vector.broadcast %cst_21 : f32 to vector<16x32xf32>
      %30 = arith.addf %28, %29 : vector<16x32xf32>
      %31 = arith.mulf %30, %26 : vector<16x32xf32>
      %cst_22 = arith.constant 1.42141378 : f32
      %32 = vector.broadcast %cst_22 : f32 to vector<16x32xf32>
      %33 = arith.addf %31, %32 : vector<16x32xf32>
      %34 = arith.mulf %33, %26 : vector<16x32xf32>
      %cst_23 = arith.constant -0.284496725 : f32
      %35 = vector.broadcast %cst_23 : f32 to vector<16x32xf32>
      %36 = arith.addf %34, %35 : vector<16x32xf32>
      %37 = arith.mulf %36, %26 : vector<16x32xf32>
      %cst_24 = arith.constant 0.254829586 : f32
      %38 = vector.broadcast %cst_24 : f32 to vector<16x32xf32>
      %39 = arith.addf %37, %38 : vector<16x32xf32>
      %40 = arith.mulf %39, %26 : vector<16x32xf32>
      %cst_25 = arith.constant 0.000000e+00 : f32
      %41 = vector.broadcast %cst_25 : f32 to vector<16x32xf32>
      %42 = arith.subf %41, %20 : vector<16x32xf32>
      %43 = arith.mulf %42, %20 : vector<16x32xf32>
      %44 = math.exp %43 : vector<16x32xf32>
      %45 = arith.mulf %40, %44 : vector<16x32xf32>
      %cst_26 = arith.constant 1.000000e+00 : f32
      %46 = vector.broadcast %cst_26 : f32 to vector<16x32xf32>
      %47 = arith.subf %46, %45 : vector<16x32xf32>
      %cst_27 = arith.constant 0.000000e+00 : f32
      %48 = vector.broadcast %cst_27 : f32 to vector<16x32xf32>
      %49 = arith.cmpf olt, %19, %48 : vector<16x32xf32>
      %cst_28 = arith.constant 0.000000e+00 : f32
      %50 = vector.broadcast %cst_28 : f32 to vector<16x32xf32>
      %51 = arith.subf %50, %47 : vector<16x32xf32>
      %52 = arith.select %49, %51, %47 : vector<16x32xi1>, vector<16x32xf32>
      %cst_29 = arith.constant 1.000000e+00 : f32
      %53 = vector.broadcast %cst_29 : f32 to vector<16x32xf32>
      %54 = arith.addf %53, %52 : vector<16x32xf32>
      %55 = arith.mulf %17, %54 : vector<16x32xf32>
      %cst_30 = arith.constant dense<0.000000e+00> : vector<16xf32>
      %56 = vector.multi_reduction <add>, %55, %cst_30 [1] : vector<16x32xf32> to vector<16xf32>
      %57 = vector.shape_cast %56 : vector<16xf32> to vector<16x1xf32>
      %cst_31 = arith.constant 3.200000e+01 : f32
      %58 = vector.broadcast %cst_31 : f32 to vector<16x1xf32>
      %59 = arith.divf %57, %58 : vector<16x1xf32>
      %60 = arith.mulf %55, %55 : vector<16x32xf32>
      %cst_32 = arith.constant dense<0.000000e+00> : vector<16xf32>
      %61 = vector.multi_reduction <add>, %60, %cst_32 [1] : vector<16x32xf32> to vector<16xf32>
      %62 = vector.shape_cast %61 : vector<16xf32> to vector<16x1xf32>
      %cst_33 = arith.constant 3.200000e+01 : f32
      %63 = vector.broadcast %cst_33 : f32 to vector<16x1xf32>
      %64 = arith.divf %62, %63 : vector<16x1xf32>
      %65 = arith.mulf %59, %59 : vector<16x1xf32>
      %66 = arith.subf %64, %65 : vector<16x1xf32>
      %cst_34 = arith.constant 0.000000e+00 : f32
      %67 = vector.broadcast %cst_34 : f32 to vector<16x1xf32>
      %68 = arith.maximumf %66, %67 : vector<16x1xf32>
      %69 = vector.broadcast %59 : vector<16x1xf32> to vector<16x32xf32>
      %70 = arith.subf %55, %69 : vector<16x32xf32>
      %cst_35 = arith.constant 9.99999974E-6 : f32
      %71 = vector.broadcast %cst_35 : f32 to vector<16x1xf32>
      %72 = arith.addf %68, %71 : vector<16x1xf32>
      %73 = math.rsqrt %72 : vector<16x1xf32>
      %74 = vector.broadcast %73 : vector<16x1xf32> to vector<16x32xf32>
      %75 = arith.mulf %70, %74 : vector<16x32xf32>
      %c0_36 = arith.constant 0 : index
      %c0_37 = arith.constant 0 : index
      %76 = vector.load %arg5[%c0_36, %c0_37] : memref<1x32xf32, #tpu.memory_space<vmem>>, vector<1x32xf32>
      %77 = vector.broadcast %76 : vector<1x32xf32> to vector<16x32xf32>
      %78 = arith.mulf %77, %75 : vector<16x32xf32>
      %c0_38 = arith.constant 0 : index
      %c0_39 = arith.constant 0 : index
      %79 = vector.load %arg6[%c0_38, %c0_39] : memref<1x32xf32, #tpu.memory_space<vmem>>, vector<1x32xf32>
      %80 = vector.broadcast %79 : vector<1x32xf32> to vector<16x32xf32>
      %81 = arith.addf %78, %80 : vector<16x32xf32>
      %c0_40 = arith.constant 0 : index
      %c0_41 = arith.constant 0 : index
      %82 = vector.load %arg10[%c0_40, %c0_41] : memref<16x32xf32, #tpu.memory_space<vmem>>, vector<16x32xf32>
      tpu.vector_store %arg10[%c0_40, %c0_41], %81 {strides = array<i32>} : memref<16x32xf32, #tpu.memory_space<vmem>>, vector<16x32xf32>,
    } else {
    }
    %c0 = arith.constant 0 : index
    %c0_1 = arith.constant 0 : index
    %3 = vector.load %arg10[%c0, %c0_1] : memref<16x32xf32, #tpu.memory_space<vmem>>, vector<16x32xf32>
    %c0_2 = arith.constant 0 : index
    %c0_3 = arith.constant 0 : index
    %4 = vector.load %arg7[%c0_2, %c0_3] : memref<32x128xf32, #tpu.memory_space<vmem>>, vector<32x128xf32>
    %cst = arith.constant dense<0.000000e+00> : vector<16x128xf32>
    %5 = tpu.matmul %3, %4, %cst {dimension_numbers = #tpu.dot_dimension_numbers<[1], [0], [0], [1], [0, 0, 1, 1], [], []>} : vector<16x32xf32>, vector<32x128xf32>, vector<16x128xf32> -> vector<16x128xf32>
    %c0_4 = arith.constant 0 : index
    %c0_5 = arith.constant 0 : index
    %6 = vector.load %arg8[%c0_4, %c0_5] : memref<1x128xf32, #tpu.memory_space<vmem>>, vector<1x128xf32>
    %7 = vector.broadcast %6 : vector<1x128xf32> to vector<16x128xf32>
    %8 = arith.addf %5, %7 : vector<16x128xf32>
    %c0_6 = arith.constant 0 : index
    %c0_7 = arith.constant 0 : index
    %9 = vector.load %arg9[%c0_6, %c0_7] : memref<16x128xf32, #tpu.memory_space<vmem>>, vector<16x128xf32>
    tpu.vector_store %arg9[%c0_6, %c0_7], %8 {strides = array<i32>} : memref<16x128xf32, #tpu.memory_space<vmem>>, vector<16x128xf32>,
    return
  }
  func.func @transform_0(%arg0: i32, %arg1: i32) -> (i32, i32) {
    %c0_i32 = arith.constant 0 : i32
    %c0_i32_0 = arith.constant 0 : i32
    return %arg0, %c0_i32 : i32, i32
  }
  func.func @transform_1(%arg0: i32, %arg1: i32) -> (i32, i32) {
    %c0_i32 = arith.constant 0 : i32
    %c0_i32_0 = arith.constant 0 : i32
    %c0_i32_1 = arith.constant 0 : i32
    return %c0_i32, %c0_i32_0 : i32, i32
  }
  func.func @transform_2(%arg0: i32, %arg1: i32) -> (i32, i32) {
    %c0_i32 = arith.constant 0 : i32
    %c0_i32_0 = arith.constant 0 : i32
    %c0_i32_1 = arith.constant 0 : i32
    return %c0_i32, %c0_i32_0 : i32, i32
  }
  func.func @transform_3(%arg0: i32, %arg1: i32) -> (i32, i32) {
    %c0_i32 = arith.constant 0 : i32
    %c0_i32_0 = arith.constant 0 : i32
    %c0_i32_1 = arith.constant 0 : i32
    return %c0_i32, %c0_i32_0 : i32, i32
  }
  func.func @transform_4(%arg0: i32, %arg1: i32) -> (i32, i32) {
    %c0_i32 = arith.constant 0 : i32
    %c0_i32_0 = arith.constant 0 : i32
    %c0_i32_1 = arith.constant 0 : i32
    return %c0_i32, %c0_i32_0 : i32, i32
  }
  func.func @transform_5(%arg0: i32, %arg1: i32) -> (i32, i32) {
    %c0_i32 = arith.constant 0 : i32
    %c0_i32_0 = arith.constant 0 : i32
    return %c0_i32, %arg1 : i32, i32
  }
  func.func @transform_6(%arg0: i32, %arg1: i32) -> (i32, i32) {
    %c0_i32 = arith.constant 0 : i32
    %c0_i32_0 = arith.constant 0 : i32
    return %c0_i32, %arg1 : i32, i32
  }
  func.func @transform_7(%arg0: i32, %arg1: i32) -> (i32, i32) {
    %c0_i32 = arith.constant 0 : i32
    return %arg0, %arg1 : i32, i32
  }
}

</mosaic_0001>

<llo_original>
// kernel: tpu_custom_call.1
$region0: #{tpu_custom_call.1}
  #allocation0 [shape = 'u32[]', space=smem, size = 0x4, offset = 0x4, fixed_abs, tag = 'smem constant byte address 0x4 - core index']
  #allocation1 [shape = 'u32[72,128]{1,0:T(1,128)}', space=vmem, size = 0x9000, scoped, tag = 'internal scratch']
  #allocation2 [shape = 'f32[16,32]{1,0:T(8,128)}', space=vmem, size = 0x2000, scoped, tag = 'scratch operand']
  %s0 = inlined_call_operand.hbm [shape: f32[16,32], index: 0, kind: input, shape index: {}]
  %s1 = inlined_call_operand.hbm [shape: f32[32,32], index: 1, kind: input, shape index: {}]
  %s2 = inlined_call_operand.vmem [shape: f32[1,32], index: 2, kind: input, shape index: {}]
  %s3 = inlined_call_operand.vmem [shape: f32[1,32], index: 3, kind: input, shape index: {}]
  %s4 = inlined_call_operand.vmem [shape: f32[1,32], index: 4, kind: input, shape index: {}]
  %s5 = inlined_call_operand.hbm [shape: f32[32,128], index: 5, kind: input, shape index: {}]
  %s6 = inlined_call_operand.vmem [shape: f32[1,128], index: 6, kind: input, shape index: {}]
  %s7 = inlined_call_operand.hbm [shape: f32[16,128], index: 7, kind: output, shape index: {}]
  %s8 = sld [smem:[#allocation0]]
  $region54: #{tpu_custom_call.1} parent=0
    _
  %s10 = ssub.s32 1, %s8
  %s11 = scalar_select 0, %s10, %s8
  $region1: #{tpu_custom_call.1} parent=0
    #allocation3 [shape = 'u8[8192]{0}', space=vmem, size = 0x2000, scoped, tag = 'input window, operand 0, single buffered']
    #allocation4 [shape = 's32[1]{0}', space=sflag, size = 0x4, scoped, tag = 'scoped memory for tpu_custom_call.1']
    #allocation5 [shape = 's32[1]{0}', space=sflag, size = 0x4, scoped, tag = 'scoped memory for tpu_custom_call.1']
    #allocation6 [shape = 'u8[16384]{0}', space=vmem, size = 0x4000, scoped, tag = 'input window, operand 1, single buffered']
    #allocation7 [shape = 's32[1]{0}', space=sflag, size = 0x4, scoped, tag = 'scoped memory for tpu_custom_call.1']
    #allocation8 [shape = 'u8[16384]{0}', space=vmem, size = 0x4000, scoped, tag = 'input window, operand 5, single buffered']
    #allocation9 [shape = 'u8[8192]{0}', space=vmem, size = 0x2000, scoped, tag = 'output window, operand 0, single buffered']
    %12 = vsyncpa [#allocation4], 0
    %13 = vsyncpa [#allocation7], 0
    %14 = vsyncpa [#allocation5], 0
    // Predicated region
    $region2: #{tpu_custom_call.1} parent=1 // pred_check
      _
    $region3: #{tpu_custom_call.1} parent=1 // pred_check_branch
      %16 = sbr.rel (0) target = $region5
    $region4: #{tpu_custom_call.1} parent=1 // pred_region
      %18 = vsyncadd [#allocation4], 0
      %s19 = sshll.u32 %s0, 4
      %s20 = int_to_ptr.hbm [resolvable:$true] %s19
      %s21 = sshll.u32 [#allocation3], 4
      %s22 = int_to_ptr.vmem [resolvable:$true] %s21
      %27 = dma.hbm_to_vmem [thread:$0]  %s20, 256, %s22, [#allocation4], 128, 128, 8
    $region5: #{tpu_custom_call.1} parent=1 // pred_fallthru
      _
    // Predicated region
    $region6: #{tpu_custom_call.1} parent=1 // pred_check
      _
    $region7: #{tpu_custom_call.1} parent=1 // pred_check_branch
      %29 = sbr.rel (0) target = $region9
    $region8: #{tpu_custom_call.1} parent=1 // pred_region
      %31 = vsyncadd [#allocation7], 0
      %s32 = sshll.u32 %s1, 4
      %s33 = int_to_ptr.hbm [resolvable:$true] %s32
      %s34 = sshll.u32 [#allocation6], 4
      %s35 = int_to_ptr.vmem [resolvable:$true] %s34
      %40 = dma.hbm_to_vmem [thread:$0]  %s33, 512, %s35, [#allocation7], 128, 128, 8
    $region9: #{tpu_custom_call.1} parent=1 // pred_fallthru
      _
    // Predicated region
    $region10: #{tpu_custom_call.1} parent=1 // pred_check
      _
    $region11: #{tpu_custom_call.1} parent=1 // pred_check_branch
      %42 = sbr.rel (0) target = $region13
    $region12: #{tpu_custom_call.1} parent=1 // pred_region
      _
    $region13: #{tpu_custom_call.1} parent=1 // pred_fallthru
      _
    // Predicated region
    $region14: #{tpu_custom_call.1} parent=1 // pred_check
      _
    $region15: #{tpu_custom_call.1} parent=1 // pred_check_branch
      %44 = sbr.rel (0) target = $region17
    $region16: #{tpu_custom_call.1} parent=1 // pred_region
      _
    $region17: #{tpu_custom_call.1} parent=1 // pred_fallthru
      _
    // Predicated region
    $region18: #{tpu_custom_call.1} parent=1 // pred_check
      _
    $region19: #{tpu_custom_call.1} parent=1 // pred_check_branch
      %46 = sbr.rel (0) target = $region21
    $region20: #{tpu_custom_call.1} parent=1 // pred_region
      _
    $region21: #{tpu_custom_call.1} parent=1 // pred_fallthru
      _
    // Predicated region
    $region22: #{tpu_custom_call.1} parent=1 // pred_check
      _
    $region23: #{tpu_custom_call.1} parent=1 // pred_check_branch
      %48 = sbr.rel (0) target = $region25
    $region24: #{tpu_custom_call.1} parent=1 // pred_region
      %50 = vsyncadd [#allocation7], 0
      %s51 = sshll.u32 %s5, 4
      %s52 = int_to_ptr.hbm [resolvable:$true] %s51
      %s53 = sshll.u32 [#allocation8], 4
      %s54 = int_to_ptr.vmem [resolvable:$true] %s53
      %59 = dma.hbm_to_vmem [thread:$0]  %s52, 512, %s54, [#allocation7], 128, 128, 8
    $region25: #{tpu_custom_call.1} parent=1 // pred_fallthru
      _
    // Predicated region
    $region26: #{tpu_custom_call.1} parent=1 // pred_check
      _
    $region27: #{tpu_custom_call.1} parent=1 // pred_check_branch
      %61 = sbr.rel (0) target = $region29
    $region28: #{tpu_custom_call.1} parent=1 // pred_region
      _
    $region29: #{tpu_custom_call.1} parent=1 // pred_fallthru
      _
    // Predicated region
    $region30: #{tpu_custom_call.1} parent=1 // pred_check
      _
    $region31: #{tpu_custom_call.1} parent=1 // pred_check_branch
      %63 = sbr.rel (0) target = $region33
    $region32: #{tpu_custom_call.1} parent=1 // pred_region
      %65 = dma.done [#allocation4], 256
    $region33: #{tpu_custom_call.1} parent=1 // pred_fallthru
      _
    // Predicated region
    $region34: #{tpu_custom_call.1} parent=1 // pred_check
      _
    $region35: #{tpu_custom_call.1} parent=1 // pred_check_branch
      %67 = sbr.rel (0) target = $region37
    $region36: #{tpu_custom_call.1} parent=1 // pred_region
      %69 = dma.done [#allocation7], 512
    $region37: #{tpu_custom_call.1} parent=1 // pred_fallthru
      _
    // Predicated region
    $region38: #{tpu_custom_call.1} parent=1 // pred_check
      _
    $region39: #{tpu_custom_call.1} parent=1 // pred_check_branch
      %71 = sbr.rel (0) target = $region41
    $region40: #{tpu_custom_call.1} parent=1 // pred_region
      %73 = dma.done [#allocation7], 512
    $region41: #{tpu_custom_call.1} parent=1 // pred_fallthru
      _
    %p74 = scmp.eq.s32.totalorder 0, 0
    // Predicated region
    $region42: #{tpu_custom_call.1} parent=1 // pred_check
      %p75 = pneg %p74
    $region43: #{tpu_custom_call.1} parent=1 // pred_check_branch
      %77 = sbr.rel (%p75) target = $region45
    $region44: #{tpu_custom_call.1} parent=1 // pred_region
      %v78 = vld [vmem:[#allocation3] sm:$0xff]
      %v79 = vld [vmem:[#allocation3 + $0x8] sm:$0xff]
      %v80 = vld [vmem:[#allocation6] sm:$0xff]
      %v81 = vld [vmem:[#allocation6 + $0x8] sm:$0xff]
      %v82 = vld [vmem:[#allocation6 + $0x10] sm:$0xff]
      %v83 = vld [vmem:[#allocation6 + $0x18] sm:$0xff]
      %v84 = vld [vmem:[%s2] sm:$0x1]
      %v86 = vperm.slane %v84, 0
      %vm88 = vcmask 261120
      %v90 = vsel %vm88, %v78, 0
      %v93 = vsel %vm88, %v79, 0
      %95 = vmatpush.msra.mxu0 0.0
      %96 = vmatpush.msra.mxu0 0.0
      %97 = vmatpush.msra.mxu0 0.0
      %98 = vmatpush.msra.mxu0 0.0
      %99 = vmatpush.msra.mxu0 0.0
      %100 = vmatpush.msra.mxu0 0.0
      %101 = vmatpush.msra.mxu0 0.0
      %102 = vmatpush.msra.mxu0 0.0
      %103 = vmatpush.msra.mxu0 0.0
      %104 = vmatpush.msra.mxu0 0.0
      %105 = vmatpush.msra.mxu0 0.0
      %106 = vmatpush.msra.mxu0 0.0
      %107 = vmatpush.msra.mxu0 %v83
      %108 = vmatpush.msra.mxu0 %v82
      %109 = vmatpush.msra.mxu0 %v81
      %110 = vmatpush.msra.mxu0 %v80
      %111 = vmatmul.f32.gmra.mxu0 %v90
      %v112 = vpop.f32.mrf.mxu0
      %v113 = vadd.f32 %v86, %v112
      %114 = vmatmul.f32.gmra.mxu0 %v93
      %v115 = vpop.f32.mrf.mxu0
      %v116 = vadd.f32 %v86, %v115
      %117 = vdwg.mxu0
      %v118 = vmul.f32 %v113, 0.5
      %v119 = vmul.f32 %v116, 0.5
      %v120 = vmul.f32 %v113, 0.70710677
      %v121 = vmul.f32 %v116, 0.70710677
      %v122 = vand.u32 2147483647, %v120
      %v123 = vand.u32 2147483647, %v121
      %v124 = vmul.f32 %v122, 0.3275911
      %v125 = vmul.f32 %v123, 0.3275911
      %v126 = vadd.f32 %v124, 1.0
      %v127 = vadd.f32 %v125, 1.0
      %v128 = vrcp.pop %v126
      %v129 = vmul.f32 %v126, %v128
      %v130 = vsub.f32 1.0, %v129
      %v131 = vmul.f32 %v128, %v130
      %v132 = vadd.f32 %v128, %v131
      %vm133 = vweird.f32 %v126
      %vm134 = vweird.f32 %v128
      %vm135 = vmor %vm133, %vm134
      %v136 = vsel %vm135, %v128, %v132
      %v137 = vand.u32 2147483647, %v126
      %vm138 = vcmp.eq.f32.partialorder %v137, 8.507059e+37
      %v139 = vand.u32 %v126, 2147483648
      %v140 = vor.u32 1.1754944e-38, %v139
      %v141 = vsel %vm138, %v140, %v136
      %v142 = vmul.f32 1.0, %v141
      %v143 = vrcp.pop %v127
      %v144 = vmul.f32 %v127, %v143
      %v145 = vsub.f32 1.0, %v144
      %v146 = vmul.f32 %v143, %v145
      %v147 = vadd.f32 %v143, %v146
      %vm148 = vweird.f32 %v127
      %vm149 = vweird.f32 %v143
      %vm150 = vmor %vm148, %vm149
      %v151 = vsel %vm150, %v143, %v147
      %v152 = vand.u32 2147483647, %v127
      %vm153 = vcmp.eq.f32.partialorder %v152, 8.507059e+37
      %v154 = vand.u32 %v127, 2147483648
      %v155 = vor.u32 1.1754944e-38, %v154
      %v156 = vsel %vm153, %v155, %v151
      %v157 = vmul.f32 1.0, %v156
      %v158 = vmul.f32 %v142, 1.0614054
      %v159 = vmul.f32 %v157, 1.0614054
      %v160 = vadd.f32 %v158, -1.4531521
      %v161 = vadd.f32 %v159, -1.4531521
      %v162 = vmul.f32 %v160, %v142
      %v163 = vmul.f32 %v161, %v157
      %v164 = vadd.f32 %v162, 1.4214138
      %v165 = vadd.f32 %v163, 1.4214138
      %v166 = vmul.f32 %v164, %v142
      %v167 = vmul.f32 %v165, %v157
      %v168 = vadd.f32 %v166, -0.28449672
      %v169 = vadd.f32 %v167, -0.28449672
      %v170 = vmul.f32 %v168, %v142
      %v171 = vmul.f32 %v169, %v157
      %v172 = vadd.f32 %v170, 0.2548296
      %v173 = vadd.f32 %v171, 0.2548296
      %v174 = vmul.f32 %v172, %v142
      %v175 = vmul.f32 %v173, %v157
      %v176 = vsub.f32 0.0, %v122
      %v177 = vsub.f32 0.0, %v123
      %v178 = vmul.f32 %v176, %v122
      %v179 = vmul.f32 %v177, %v123
      %v180 = vmul.f32 %v178, 1.442695
      %v181 = vpow.pop %v180
      %v182 = vmul.f32 %v179, 1.442695
      %v183 = vpow.pop %v182
      %v184 = vmul.f32 %v174, %v181
      %v185 = vmul.f32 %v175, %v183
      %v186 = vsub.f32 1.0, %v184
      %v187 = vsub.f32 1.0, %v185
      %vm188 = vcmp.lt.f32.partialorder %v120, 0.0
      %vm189 = vcmp.lt.f32.partialorder %v121, 0.0
      %v190 = vsub.f32 0.0, %v186
      %v191 = vsub.f32 0.0, %v187
      %v192 = vsel %vm188, %v190, %v186
      %v193 = vsel %vm189, %v191, %v187
      %v194 = vadd.f32 %v192, 1.0
      %v195 = vadd.f32 %v193, 1.0
      %v196 = vmul.f32 %v118, %v194
      %v197 = vmul.f32 %v119, %v195
      %v198 = vsel %vm88, %v196, 0.0
      %199 = vadd.xlane.f32.xlu0 %v198
      %v200 = vpop.xlane.xlu0 %199
      %v201 = vsel %vm88, %v197, 0.0
      %202 = vadd.xlane.f32.xlu0 %v201
      %v203 = vpop.xlane.xlu0 %202
      %v204 = vrcp.pop 32.0
      %v205 = vmul.f32 32.0, %v204
      %v206 = vsub.f32 1.0, %v205
      %v207 = vmul.f32 %v204, %v206
      %v208 = vadd.f32 %v204, %v207
      %vm209 = vweird.f32 %v204
      %v210 = vsel %vm209, %v204, %v208
      %v211 = vmul.f32 %v200, %v210
      %v212 = vmul.f32 %v203, %v210
      %v213 = vmul.f32 %v196, %v196
      %v214 = vmul.f32 %v197, %v197
      %v215 = vsel %vm88, %v213, 0.0
      %216 = vadd.xlane.f32.xlu0 %v215
      %v217 = vpop.xlane.xlu0 %216
      %v218 = vsel %vm88, %v214, 0.0
      %219 = vadd.xlane.f32.xlu0 %v218
      %v220 = vpop.xlane.xlu0 %219
      %v221 = vmul.f32 %v217, %v210
      %v222 = vmul.f32 %v220, %v210
      %v223 = vmul.f32 %v211, %v211
      %v224 = vmul.f32 %v212, %v212
      %v225 = vsub.f32 %v221, %v223
      %v226 = vsub.f32 %v222, %v224
      %v227 = vmax.f32 %v225, 0.0
      %v228 = vmax.f32 %v226, 0.0
      %v229 = vsub.f32 %v196, %v211
      %v230 = vsub.f32 %v197, %v212
      %v231 = vadd.f32 %v227, 1e-05
      %v232 = vadd.f32 %v228, 1e-05
      %v233 = vrsqrt.pop %v231
      %v234 = vmul.f32 %v233, %v231
      %v235 = vmul.f32 %v234, %v233
      %v236 = vmul.f32 0.5, %v235
      %v237 = vsub.f32 1.5, %v236
      %v238 = vmul.f32 %v233, %v237
      %vm239 = vweird.f32 %v231
      %vm240 = vweird.f32 %v233
      %vm241 = vmor %vm239, %vm240
      %v242 = vsel %vm241, %v233, %v238
      %v243 = vrsqrt.pop %v232
      %v244 = vmul.f32 %v243, %v232
      %v245 = vmul.f32 %v244, %v243
      %v246 = vmul.f32 0.5, %v245
      %v247 = vsub.f32 1.5, %v246
      %v248 = vmul.f32 %v243, %v247
      %vm249 = vweird.f32 %v232
      %vm250 = vweird.f32 %v243
      %vm251 = vmor %vm249, %vm250
      %v252 = vsel %vm251, %v243, %v248
      %v253 = vmul.f32 %v229, %v242
      %v254 = vmul.f32 %v230, %v252
      %v255 = vld [vmem:[%s3] sm:$0x1]
      %v257 = vperm.slane %v255, 0
      %v259 = vmul.f32 %v257, %v253
      %v260 = vmul.f32 %v257, %v254
      %v261 = vld [vmem:[%s4] sm:$0x1]
      %v263 = vperm.slane %v261, 0
      %v265 = vadd.f32 %v259, %v263
      %v266 = vadd.f32 %v260, %v263
      %267 = vst.msk [vmem:[#allocation2] sm:$0xff] %vm88, %v265
      %268 = vst.msk [vmem:[#allocation2 + $0x8] sm:$0xff] %vm88, %v266
    $region45: #{tpu_custom_call.1} parent=1 // pred_fallthru
      _
    %v269 = vld [vmem:[#allocation2] sm:$0xff]
    %v270 = vld [vmem:[#allocation2 + $0x8] sm:$0xff]
    %v271 = vld [vmem:[#allocation8] sm:$0xff]
    %v272 = vld [vmem:[#allocation8 + $0x8] sm:$0xff]
    %v273 = vld [vmem:[#allocation8 + $0x10] sm:$0xff]
    %v274 = vld [vmem:[#allocation8 + $0x18] sm:$0xff]
    %v275 = vld [vmem:[%s6] sm:$0x1]
    %v277 = vperm.slane %v275, 0
    %vm279 = vcmask 261120
    %v281 = vsel %vm279, %v269, 0
    %v284 = vsel %vm279, %v270, 0
    %286 = vmatpush.msra.mxu0 0.0
    %287 = vmatpush.msra.mxu0 0.0
    %288 = vmatpush.msra.mxu0 0.0
    %289 = vmatpush.msra.mxu0 0.0
    %290 = vmatpush.msra.mxu0 0.0
    %291 = vmatpush.msra.mxu0 0.0
    %292 = vmatpush.msra.mxu0 0.0
    %293 = vmatpush.msra.mxu0 0.0
    %294 = vmatpush.msra.mxu0 0.0
    %295 = vmatpush.msra.mxu0 0.0
    %296 = vmatpush.msra.mxu0 0.0
    %297 = vmatpush.msra.mxu0 0.0
    %298 = vmatpush.msra.mxu0 %v274
    %299 = vmatpush.msra.mxu0 %v273
    %300 = vmatpush.msra.mxu0 %v272
    %301 = vmatpush.msra.mxu0 %v271
    %302 = vmatmul.f32.gmra.mxu0 %v281
    %v303 = vpop.f32.mrf.mxu0
    %v304 = vadd.f32 %v277, %v303
    %305 = vmatmul.f32.gmra.mxu0 %v284
    %v306 = vpop.f32.mrf.mxu0
    %v307 = vadd.f32 %v277, %v306
    %308 = vdwg.mxu0
    %309 = vst [vmem:[#allocation9] sm:$0xff] %v304
    %310 = vst [vmem:[#allocation9 + $0x8] sm:$0xff] %v307
    // Predicated region
    $region46: #{tpu_custom_call.1} parent=1 // pred_check
      _
    $region47: #{tpu_custom_call.1} parent=1 // pred_check_branch
      %312 = sbr.rel (0) target = $region49
    $region48: #{tpu_custom_call.1} parent=1 // pred_region
      %314 = vsyncadd [#allocation5], 0
      %s315 = sshll.u32 [#allocation9], 4
      %s316 = int_to_ptr.vmem [resolvable:$true] %s315
      %s317 = sshll.u32 %s7, 4
      %s318 = int_to_ptr.hbm [resolvable:$true] %s317
      %323 = dma.vmem_to_hbm [thread:$0]  %s316, 256, %s318, [#allocation5], 128, 128, 8
    $region49: #{tpu_custom_call.1} parent=1 // pred_fallthru
      _
    // Predicated region
    $region50: #{tpu_custom_call.1} parent=1 // pred_check
      _
    $region51: #{tpu_custom_call.1} parent=1 // pred_check_branch
      %325 = sbr.rel (0) target = $region53
    $region52: #{tpu_custom_call.1} parent=1 // pred_region
      %327 = dma.done [#allocation5], 256
    $region53: #{tpu_custom_call.1} parent=1 // pred_fallthru
      _
    %328 = vsyncpa [#allocation4], 1
    %329 = vsyncpa [#allocation7], 1
    %330 = vsyncpa [#allocation5], 1

</llo_original>
